<compile_context>
chip_gen: v6e
topology: v6e:2x2x1
jax: 0.10.0
libtpu: 0.0.40
codegen_flags: <defaults>
</compile_context>

<pallas_src>
import functools
import itertools

import numpy as np
import jax
import jax.numpy as jnp
from jax.experimental import pallas as pl
from jax.experimental.pallas import tpu as pltpu


def _cost_kernel(logits_ref, boxes_ref, onehot_ref, tboxes_ref, c_ref,
                 *, w_class, w_bbox, w_giou):
    # ---- class cost: un-normalized exp -> bf16 MXU matmul vs {0,-1} one-hot ----
    logits = logits_ref[...]                                   # (TILE_N, nc_pad) f32
    m = jnp.max(logits, axis=-1, keepdims=True)
    e = jnp.exp(logits - m)                                    # EUP
    # Deferred softmax normalization: matmul on un-normalized e (single bf16 MXU pass);
    # the weight and 1/sum(e) are applied later via a narrow (TILE_N,1) column.
    s = jnp.dot(e.astype(jnp.bfloat16), onehot_ref[...],
                preferred_element_type=jnp.float32)            # (TILE_N, T_pad) = -e[:, tgt]
    denom = jnp.sum(e, axis=-1, keepdims=True)                 # (TILE_N, 1)
    class_scale = w_class / denom                              # exact division, narrow column

    # ---- pairwise L1 (cdist p=1) and generalized IoU on the VPU ----
    ob = boxes_ref[...]                                        # (TILE_N, 4) cx,cy,w,h
    tbT = tboxes_ref[...]                                      # (4, T_pad)  cx,cy,w,h (transposed)
    ocx, ocy, ow, oh = ob[:, 0:1], ob[:, 1:2], ob[:, 2:3], ob[:, 3:4]        # (TILE_N,1)
    tcx, tcy, tw, th = tbT[0:1, :], tbT[1:2, :], tbT[2:3, :], tbT[3:4, :]    # (1,T_pad)

    cost_bbox = (jnp.abs(ocx - tcx) + jnp.abs(ocy - tcy)
                 + jnp.abs(ow - tw) + jnp.abs(oh - th))        # (TILE_N, T_pad)

    # cxcywh -> xyxy
    ox0, oy0, ox1, oy1 = ocx - 0.5 * ow, ocy - 0.5 * oh, ocx + 0.5 * ow, ocy + 0.5 * oh
    tx0, ty0, tx1, ty1 = tcx - 0.5 * tw, tcy - 0.5 * th, tcx + 0.5 * tw, tcy + 0.5 * th

    area_o = (ox1 - ox0) * (oy1 - oy0)                         # (TILE_N, 1)
    area_t = (tx1 - tx0) * (ty1 - ty0)                         # (1, T_pad)

    ix0 = jnp.maximum(ox0, tx0)
    iy0 = jnp.maximum(oy0, ty0)
    ix1 = jnp.minimum(ox1, tx1)
    iy1 = jnp.minimum(oy1, ty1)
    inter = jnp.maximum(ix1 - ix0, 0.0) * jnp.maximum(iy1 - iy0, 0.0)
    union = area_o + area_t - inter
    iou = inter * pl.reciprocal(union, approx=True)            # EUP

    # Enclosing box: no clamps needed (ex1>=ex0, ey1>=ey0 always hold for w,h >= 0).
    ex0 = jnp.minimum(ox0, tx0)
    ey0 = jnp.minimum(oy0, ty0)
    ex1 = jnp.maximum(ox1, tx1)
    ey1 = jnp.maximum(oy1, ty1)
    encl = (ex1 - ex0) * (ey1 - ey0)
    giou = iou - (encl - union) * pl.reciprocal(encl, approx=True)

    c = w_bbox * cost_bbox + s * class_scale - w_giou * giou
    c_ref[...] = c.astype(c_ref.dtype)


def _round_up(x, m):
    return ((x + m - 1) // m) * m


def _choose_tile_n(n_rows, nc_pad, t_pad, out_bytes=4,
                   vmem_budget_bytes=10 * 1024 * 1024):
    """Row-tile sized from an explicit VMEM model.

    Accounts for: double-buffered streamed blocks (f32 logits; the (tile_n,4) boxes
    block which lane-pads to 128 in VMEM; the output), the double-buffered resident
    one-hot (bf16) and target-box blocks, and a few full-width f32 temporaries the
    kernel materializes.  Budget is kept well under v7x's 64 MiB physical VMEM.
    """
    resident = 2 * nc_pad * t_pad * 2 + 2 * 8 * t_pad * 4      # onehot(bf16) + tboxes (sublane-padded)
    budget = max(vmem_budget_bytes - resident, 1 << 20)
    bytes_per_row = (2 * nc_pad * 4          # logits, double buffered, f32
                     + 2 * 128 * 4           # (tile_n, 4) boxes block lane-pads to 128
                     + 2 * t_pad * out_bytes  # output stream, double buffered
                     + 4 * t_pad * 4)        # full-width f32 temporaries headroom
    tile = budget // bytes_per_row
    tile = max(8, min(1024, (tile // 8) * 8))
    # Keep >= 2 row tiles so v7x's two TensorCores both get work on the "parallel" axis.
    if n_rows >= 16:
        tile = min(tile, _round_up(pl.cdiv(n_rows, 2), 8))
    return min(tile, _round_up(n_rows, 8))


def _cost_matrix_padded(pred_logits, pred_boxes, tgt_ids, tgt_bbox,
                        cost_class=1.0, cost_bbox=1.0, cost_giou=1.0,
                        out_dtype=jnp.float32):
    """Runs the Pallas kernel; returns the padded (N_pad, T_pad) matrix plus (N, T)."""
    bs, nq, nc = pred_logits.shape
    N = bs * nq
    T = int(tgt_ids.shape[0])

    nc_pad = _round_up(nc, 128)
    T_pad = _round_up(max(T, 1), 128)
    out_bytes = jnp.dtype(out_dtype).itemsize
    tile_n = _choose_tile_n(N, nc_pad, T_pad, out_bytes)
    N_pad = _round_up(N, tile_n)
    grid_n = N_pad // tile_n

    # ---- pad inputs to lane/sublane-friendly shapes ----
    logits = pred_logits.reshape(N, nc).astype(jnp.float32)
    logits = jnp.pad(logits, ((0, N_pad - N), (0, nc_pad - nc)),
                     constant_values=-1e9)                      # padded classes -> exp ~ 0
    boxes = pred_boxes.reshape(N, 4).astype(jnp.float32)
    boxes = jnp.pad(boxes, ((0, N_pad - N), (0, 0)), constant_values=0.5)

    # One-hot built directly at (nc_pad, T_pad) in bf16 with the class-cost sign baked in
    # (-1 at the target class, 0 elsewhere; padded target columns use id -1 -> all zero).
    ids = jnp.full((T_pad,), -1, dtype=jnp.int32).at[:T].set(tgt_ids.astype(jnp.int32))
    cls_iota = jax.lax.broadcasted_iota(jnp.int32, (nc_pad, T_pad), 0)
    onehot_neg = jnp.where(cls_iota == ids[None, :], -1.0, 0.0).astype(jnp.bfloat16)

    tboxes_t = jnp.pad(tgt_bbox.astype(jnp.float32).T, ((0, 0), (0, T_pad - T)),
                       constant_values=0.5)                      # (4, T_pad), padded cols valid

    kernel = functools.partial(_cost_kernel,
                               w_class=float(cost_class),
                               w_bbox=float(cost_bbox),
                               w_giou=float(cost_giou))

    C_pad = pl.pallas_call(
        kernel,
        out_shape=jax.ShapeDtypeStruct((N_pad, T_pad), out_dtype),
        grid=(grid_n,),
        in_specs=[
            pl.BlockSpec((tile_n, nc_pad), lambda i: (i, 0)),   # streamed per row tile
            pl.BlockSpec((tile_n, 4), lambda i: (i, 0)),        # streamed per row tile
            pl.BlockSpec((nc_pad, T_pad), lambda i: (0, 0)),    # resident (bf16 one-hot)
            pl.BlockSpec((4, T_pad), lambda i: (0, 0)),         # resident (target boxes)
        ],
        out_specs=pl.BlockSpec((tile_n, T_pad), lambda i: (i, 0)),
        compiler_params=pltpu.CompilerParams(
            dimension_semantics=("parallel",),
            vmem_limit_bytes=32 * 1024 * 1024),
    )(logits, boxes, onehot_neg, tboxes_t)
    return C_pad, N, T


def compute_cost_matrix(pred_logits, pred_boxes, tgt_ids, tgt_bbox,
                        cost_class=1.0, cost_bbox=1.0, cost_giou=1.0,
                        out_dtype=jnp.float32):
    """Returns the cost matrix C with shape (bs, num_queries, T) as a host NumPy array.

    The device returns the padded matrix; slicing/reshaping happens on the host, which
    is where the result is consumed (assignment), saving a device-side HBM round trip.
    """
    bs, nq, _ = pred_logits.shape
    C_pad, N, T = _cost_matrix_padded(pred_logits, pred_boxes, tgt_ids, tgt_bbox,
                                      cost_class, cost_bbox, cost_giou, out_dtype)
    C_pad = np.asarray(jax.block_until_ready(C_pad))
    return C_pad[:N, :T].reshape(bs, nq, T)


def _linear_sum_assignment_bruteforce(cost):
    """Exact min-cost assignment on a (num_queries, num_targets) matrix, num_targets small."""
    nq, nt = cost.shape
    best_rows, best_cost = None, float("inf")
    for perm in itertools.permutations(range(nq), nt):
        c = sum(cost[perm[j], j] for j in range(nt))
        if c < best_cost:
            best_cost, best_rows = c, perm
    rows = np.asarray(best_rows, dtype=np.int64)
    cols = np.arange(nt, dtype=np.int64)
    order = np.argsort(rows)
    return rows[order], cols[order]


def hungarian_matcher(outputs, targets, cost_class=1.0, cost_bbox=1.0, cost_giou=1.0):
    """JAX/Pallas equivalent of HungarianMatcher.forward."""
    assert cost_class != 0 or cost_bbox != 0 or cost_giou != 0, "all costs cant be 0"
    tgt_ids = jnp.concatenate([v["labels"] for v in targets])
    tgt_bbox = jnp.concatenate([v["boxes"] for v in targets])
    C = compute_cost_matrix(outputs["pred_logits"], outputs["pred_boxes"],
                            tgt_ids, tgt_bbox, cost_class, cost_bbox, cost_giou)
    sizes = [int(v["boxes"].shape[0]) for v in targets]

    # TODO(synk): scipy.optimize.linear_sum_assignment has no Pallas equivalent; exact
    # host-side brute-force assignment is used here (valid for the small synthetic sizes).
    indices = []
    offset = 0
    for i, sz in enumerate(sizes):
        sub = C[i][:, offset:offset + sz]
        indices.append(_linear_sum_assignment_bruteforce(sub))
        offset += sz
    return indices


def _reference_cost_matrix(pred_logits, pred_boxes, tgt_ids, tgt_bbox):
    """Pure-JAX reference for the cost-matrix hot path (sanity check)."""
    bs, nq, nc = pred_logits.shape
    out_prob = jax.nn.softmax(pred_logits.reshape(-1, nc), axis=-1)
    out_bbox = pred_boxes.reshape(-1, 4)
    cost_class = -out_prob[:, tgt_ids]
    cost_bbox = jnp.abs(out_bbox[:, None, :] - tgt_bbox[None, :, :]).sum(-1)

    def to_xyxy(b):
        cx, cy, w, h = b[..., 0], b[..., 1], b[..., 2], b[..., 3]
        return jnp.stack([cx - 0.5 * w, cy - 0.5 * h, cx + 0.5 * w, cy + 0.5 * h], axis=-1)

    b1, b2 = to_xyxy(out_bbox), to_xyxy(tgt_bbox)
    a1 = (b1[:, 2] - b1[:, 0]) * (b1[:, 3] - b1[:, 1])
    a2 = (b2[:, 2] - b2[:, 0]) * (b2[:, 3] - b2[:, 1])
    lt = jnp.maximum(b1[:, None, :2], b2[None, :, :2])
    rb = jnp.minimum(b1[:, None, 2:], b2[None, :, 2:])
    wh = jnp.clip(rb - lt, 0.0)
    inter = wh[..., 0] * wh[..., 1]
    union = a1[:, None] + a2[None, :] - inter
    iou = inter / union
    lt2 = jnp.minimum(b1[:, None, :2], b2[None, :, :2])
    rb2 = jnp.maximum(b1[:, None, 2:], b2[None, :, 2:])
    wh2 = jnp.clip(rb2 - lt2, 0.0)
    encl = wh2[..., 0] * wh2[..., 1]
    giou = iou - (encl - union) / encl
    C = cost_bbox + cost_class - giou
    return C.reshape(bs, nq, -1)


if __name__ == "__main__":
    key = jax.random.PRNGKey(0)
    bs, num_queries, num_classes = 2, 8, 32
    sizes = [3, 4]  # targets per batch element

    k1, k2, k3, k4 = jax.random.split(key, 4)
    pred_logits = jax.random.normal(k1, (bs, num_queries, num_classes), dtype=jnp.float32)
    pred_boxes = jax.nn.sigmoid(jax.random.normal(k2, (bs, num_queries, 4), dtype=jnp.float32))

    targets = []
    kl = jax.random.split(k3, bs)
    kb = jax.random.split(k4, bs)
    for i, sz in enumerate(sizes):
        labels = jax.random.randint(kl[i], (sz,), 0, num_classes, dtype=jnp.int32)
        cxy = jax.random.uniform(kb[i], (sz, 2), minval=0.25, maxval=0.75, dtype=jnp.float32)
        wh = jax.random.uniform(jax.random.fold_in(kb[i], 1), (sz, 2),
                                minval=0.1, maxval=0.3, dtype=jnp.float32)
        targets.append({"labels": labels, "boxes": jnp.concatenate([cxy, wh], axis=-1)})

    outputs = {"pred_logits": pred_logits, "pred_boxes": pred_boxes}

    # Kernel cost matrix vs pure-JAX reference (tolerance accounts for bf16 MXU operands
    # and EUP approx reciprocals in the full-width divisions).
    tgt_ids = jnp.concatenate([t["labels"] for t in targets])
    tgt_bbox = jnp.concatenate([t["boxes"] for t in targets])
    C_kernel = compute_cost_matrix(pred_logits, pred_boxes, tgt_ids, tgt_bbox)
    C_ref = np.asarray(_reference_cost_matrix(pred_logits, pred_boxes, tgt_ids, tgt_bbox))
    assert C_kernel.shape == C_ref.shape
    assert np.all(np.isfinite(C_kernel))
    np.testing.assert_allclose(C_kernel, C_ref, rtol=2e-2, atol=2e-2)

    indices = hungarian_matcher(outputs, targets)
    for (ri, ci), sz in zip(indices, sizes):
        assert ri.shape == (sz,) and ci.shape == (sz,)
        assert ri.dtype == np.int64 and ci.dtype == np.int64

    print("KERNEL_OK")
</pallas_src>

<mosaic_0001>
module attributes {stable_mosaic.version = 11 : i64} {
  func.func @_cost_kernel(%arg0: i32, %arg1: memref<8x128xf32, #tpu.memory_space<vmem>>, %arg2: memref<8x4xf32, #tpu.memory_space<vmem>>, %arg3: memref<128x128xbf16, #tpu.memory_space<vmem>>, %arg4: memref<4x128xf32, #tpu.memory_space<vmem>>, %arg5: memref<8x128xf32, #tpu.memory_space<vmem>>) attributes {dimension_semantics = [#tpu.dimension_semantics<parallel>], iteration_bounds = array<i64: 2>, scalar_prefetch = 0 : i64, scratch_operands = 0 : i64, tpu.core_type = #tpu.core_type<tc>, window_params = [{transform_indices = @transform_0, window_bounds = array<i64: 8, 128>}, {transform_indices = @transform_1, window_bounds = array<i64: 8, 4>}, {pipeline_mode = #tpu.pipeline_mode<synchronous>, transform_indices = @transform_2, window_bounds = array<i64: 128, 128>}, {pipeline_mode = #tpu.pipeline_mode<synchronous>, transform_indices = @transform_3, window_bounds = array<i64: 4, 128>}, {transform_indices = @transform_4, window_bounds = array<i64: 8, 128>}]} {
    %c0 = arith.constant 0 : index
    %c0_0 = arith.constant 0 : index
    %0 = vector.load %arg1[%c0, %c0_0] : memref<8x128xf32, #tpu.memory_space<vmem>>, vector<8x128xf32>
    %cst = arith.constant dense<0xFF800000> : vector<8xf32>
    %1 = vector.multi_reduction <maximumf>, %0, %cst [1] : vector<8x128xf32> to vector<8xf32>
    %2 = vector.shape_cast %1 : vector<8xf32> to vector<8x1xf32>
    %3 = vector.broadcast %2 : vector<8x1xf32> to vector<8x128xf32>
    %4 = arith.subf %0, %3 : vector<8x128xf32>
    %5 = math.exp %4 : vector<8x128xf32>
    %6 = arith.truncf %5 : vector<8x128xf32> to vector<8x128xbf16>
    %c0_1 = arith.constant 0 : index
    %c0_2 = arith.constant 0 : index
    %7 = vector.load %arg3[%c0_1, %c0_2] : memref<128x128xbf16, #tpu.memory_space<vmem>>, vector<128x128xbf16>
    %cst_3 = arith.constant dense<0.000000e+00> : vector<8x128xf32>
    %8 = tpu.matmul %6, %7, %cst_3 {dimension_numbers = #tpu.dot_dimension_numbers<[1], [0], [0], [1], [0, 0, 1, 1], [], []>} : vector<8x128xbf16>, vector<128x128xbf16>, vector<8x128xf32> -> vector<8x128xf32>
    %cst_4 = arith.constant dense<0.000000e+00> : vector<8xf32>
    %9 = vector.multi_reduction <add>, %5, %cst_4 [1] : vector<8x128xf32> to vector<8xf32>
    %10 = vector.shape_cast %9 : vector<8xf32> to vector<8x1xf32>
    %cst_5 = arith.constant 1.000000e+00 : f32
    %11 = vector.broadcast %cst_5 : f32 to vector<8x1xf32>
    %12 = arith.divf %11, %10 : vector<8x1xf32>
    %c0_6 = arith.constant 0 : index
    %c0_7 = arith.constant 0 : index
    %13 = vector.load %arg2[%c0_6, %c0_7] : memref<8x4xf32, #tpu.memory_space<vmem>>, vector<8x4xf32>
    %c0_8 = arith.constant 0 : index
    %c0_9 = arith.constant 0 : index
    %14 = vector.load %arg4[%c0_8, %c0_9] : memref<4x128xf32, #tpu.memory_space<vmem>>, vector<4x128xf32>
    %15 = vector.extract_strided_slice %13 {offsets = [0, 0], sizes = [8, 1], strides = [1, 1]} : vector<8x4xf32> to vector<8x1xf32>
    %16 = vector.extract_strided_slice %13 {offsets = [0, 1], sizes = [8, 1], strides = [1, 1]} : vector<8x4xf32> to vector<8x1xf32>
    %17 = vector.extract_strided_slice %13 {offsets = [0, 2], sizes = [8, 1], strides = [1, 1]} : vector<8x4xf32> to vector<8x1xf32>
    %18 = vector.extract_strided_slice %13 {offsets = [0, 3], sizes = [8, 1], strides = [1, 1]} : vector<8x4xf32> to vector<8x1xf32>
    %19 = vector.extract_strided_slice %14 {offsets = [0, 0], sizes = [1, 128], strides = [1, 1]} : vector<4x128xf32> to vector<1x128xf32>
    %20 = vector.extract_strided_slice %14 {offsets = [1, 0], sizes = [1, 128], strides = [1, 1]} : vector<4x128xf32> to vector<1x128xf32>
    %21 = vector.extract_strided_slice %14 {offsets = [2, 0], sizes = [1, 128], strides = [1, 1]} : vector<4x128xf32> to vector<1x128xf32>
    %22 = vector.extract_strided_slice %14 {offsets = [3, 0], sizes = [1, 128], strides = [1, 1]} : vector<4x128xf32> to vector<1x128xf32>
    %23 = vector.broadcast %15 : vector<8x1xf32> to vector<8x128xf32>
    %24 = vector.broadcast %19 : vector<1x128xf32> to vector<8x128xf32>
    %25 = arith.subf %23, %24 : vector<8x128xf32>
    %26 = math.absf %25 : vector<8x128xf32>
    %27 = vector.broadcast %16 : vector<8x1xf32> to vector<8x128xf32>
    %28 = vector.broadcast %20 : vector<1x128xf32> to vector<8x128xf32>
    %29 = arith.subf %27, %28 : vector<8x128xf32>
    %30 = math.absf %29 : vector<8x128xf32>
    %31 = arith.addf %26, %30 : vector<8x128xf32>
    %32 = vector.broadcast %17 : vector<8x1xf32> to vector<8x128xf32>
    %33 = vector.broadcast %21 : vector<1x128xf32> to vector<8x128xf32>
    %34 = arith.subf %32, %33 : vector<8x128xf32>
    %35 = math.absf %34 : vector<8x128xf32>
    %36 = arith.addf %31, %35 : vector<8x128xf32>
    %37 = vector.broadcast %18 : vector<8x1xf32> to vector<8x128xf32>
    %38 = vector.broadcast %22 : vector<1x128xf32> to vector<8x128xf32>
    %39 = arith.subf %37, %38 : vector<8x128xf32>
    %40 = math.absf %39 : vector<8x128xf32>
    %41 = arith.addf %36, %40 : vector<8x128xf32>
    %cst_10 = arith.constant 5.000000e-01 : f32
    %42 = vector.broadcast %cst_10 : f32 to vector<8x1xf32>
    %43 = arith.mulf %42, %17 : vector<8x1xf32>
    %44 = arith.subf %15, %43 : vector<8x1xf32>
    %cst_11 = arith.constant 5.000000e-01 : f32
    %45 = vector.broadcast %cst_11 : f32 to vector<8x1xf32>
    %46 = arith.mulf %45, %18 : vector<8x1xf32>
    %47 = arith.subf %16, %46 : vector<8x1xf32>
    %cst_12 = arith.constant 5.000000e-01 : f32
    %48 = vector.broadcast %cst_12 : f32 to vector<8x1xf32>
    %49 = arith.mulf %48, %17 : vector<8x1xf32>
    %50 = arith.addf %15, %49 : vector<8x1xf32>
    %cst_13 = arith.constant 5.000000e-01 : f32
    %51 = vector.broadcast %cst_13 : f32 to vector<8x1xf32>
    %52 = arith.mulf %51, %18 : vector<8x1xf32>
    %53 = arith.addf %16, %52 : vector<8x1xf32>
    %cst_14 = arith.constant 5.000000e-01 : f32
    %54 = vector.broadcast %cst_14 : f32 to vector<1x128xf32>
    %55 = arith.mulf %54, %21 : vector<1x128xf32>
    %56 = arith.subf %19, %55 : vector<1x128xf32>
    %cst_15 = arith.constant 5.000000e-01 : f32
    %57 = vector.broadcast %cst_15 : f32 to vector<1x128xf32>
    %58 = arith.mulf %57, %22 : vector<1x128xf32>
    %59 = arith.subf %20, %58 : vector<1x128xf32>
    %cst_16 = arith.constant 5.000000e-01 : f32
    %60 = vector.broadcast %cst_16 : f32 to vector<1x128xf32>
    %61 = arith.mulf %60, %21 : vector<1x128xf32>
    %62 = arith.addf %19, %61 : vector<1x128xf32>
    %cst_17 = arith.constant 5.000000e-01 : f32
    %63 = vector.broadcast %cst_17 : f32 to vector<1x128xf32>
    %64 = arith.mulf %63, %22 : vector<1x128xf32>
    %65 = arith.addf %20, %64 : vector<1x128xf32>
    %66 = arith.subf %50, %44 : vector<8x1xf32>
    %67 = arith.subf %53, %47 : vector<8x1xf32>
    %68 = arith.mulf %66, %67 : vector<8x1xf32>
    %69 = arith.subf %62, %56 : vector<1x128xf32>
    %70 = arith.subf %65, %59 : vector<1x128xf32>
    %71 = arith.mulf %69, %70 : vector<1x128xf32>
    %72 = vector.broadcast %44 : vector<8x1xf32> to vector<8x128xf32>
    %73 = vector.broadcast %56 : vector<1x128xf32> to vector<8x128xf32>
    %74 = arith.maximumf %72, %73 : vector<8x128xf32>
    %75 = vector.broadcast %47 : vector<8x1xf32> to vector<8x128xf32>
    %76 = vector.broadcast %59 : vector<1x128xf32> to vector<8x128xf32>
    %77 = arith.maximumf %75, %76 : vector<8x128xf32>
    %78 = vector.broadcast %50 : vector<8x1xf32> to vector<8x128xf32>
    %79 = vector.broadcast %62 : vector<1x128xf32> to vector<8x128xf32>
    %80 = arith.minimumf %78, %79 : vector<8x128xf32>
    %81 = vector.broadcast %53 : vector<8x1xf32> to vector<8x128xf32>
    %82 = vector.broadcast %65 : vector<1x128xf32> to vector<8x128xf32>
    %83 = arith.minimumf %81, %82 : vector<8x128xf32>
    %84 = arith.subf %80, %74 : vector<8x128xf32>
    %cst_18 = arith.constant 0.000000e+00 : f32
    %85 = vector.broadcast %cst_18 : f32 to vector<8x128xf32>
    %86 = arith.maximumf %84, %85 : vector<8x128xf32>
    %87 = arith.subf %83, %77 : vector<8x128xf32>
    %cst_19 = arith.constant 0.000000e+00 : f32
    %88 = vector.broadcast %cst_19 : f32 to vector<8x128xf32>
    %89 = arith.maximumf %87, %88 : vector<8x128xf32>
    %90 = arith.mulf %86, %89 : vector<8x128xf32>
    %91 = vector.broadcast %68 : vector<8x1xf32> to vector<8x128xf32>
    %92 = vector.broadcast %71 : vector<1x128xf32> to vector<8x128xf32>
    %93 = arith.addf %91, %92 : vector<8x128xf32>
    %94 = arith.subf %93, %90 : vector<8x128xf32>
    %95 = tpu.reciprocal %94 {approx = true} : vector<8x128xf32> -> vector<8x128xf32>
    %96 = arith.mulf %90, %95 : vector<8x128xf32>
    %97 = vector.broadcast %44 : vector<8x1xf32> to vector<8x128xf32>
    %98 = vector.broadcast %56 : vector<1x128xf32> to vector<8x128xf32>
    %99 = arith.minimumf %97, %98 : vector<8x128xf32>
    %100 = vector.broadcast %47 : vector<8x1xf32> to vector<8x128xf32>
    %101 = vector.broadcast %59 : vector<1x128xf32> to vector<8x128xf32>
    %102 = arith.minimumf %100, %101 : vector<8x128xf32>
    %103 = vector.broadcast %50 : vector<8x1xf32> to vector<8x128xf32>
    %104 = vector.broadcast %62 : vector<1x128xf32> to vector<8x128xf32>
    %105 = arith.maximumf %103, %104 : vector<8x128xf32>
    %106 = vector.broadcast %53 : vector<8x1xf32> to vector<8x128xf32>
    %107 = vector.broadcast %65 : vector<1x128xf32> to vector<8x128xf32>
    %108 = arith.maximumf %106, %107 : vector<8x128xf32>
    %109 = arith.subf %105, %99 : vector<8x128xf32>
    %110 = arith.subf %108, %102 : vector<8x128xf32>
    %111 = arith.mulf %109, %110 : vector<8x128xf32>
    %112 = arith.subf %111, %94 : vector<8x128xf32>
    %113 = tpu.reciprocal %111 {approx = true} : vector<8x128xf32> -> vector<8x128xf32>
    %114 = arith.mulf %112, %113 : vector<8x128xf32>
    %115 = arith.subf %96, %114 : vector<8x128xf32>
    %cst_20 = arith.constant 1.000000e+00 : f32
    %116 = vector.broadcast %cst_20 : f32 to vector<8x128xf32>
    %117 = arith.mulf %116, %41 : vector<8x128xf32>
    %118 = vector.broadcast %12 : vector<8x1xf32> to vector<8x128xf32>
    %119 = arith.mulf %8, %118 : vector<8x128xf32>
    %120 = arith.addf %117, %119 : vector<8x128xf32>
    %cst_21 = arith.constant 1.000000e+00 : f32
    %121 = vector.broadcast %cst_21 : f32 to vector<8x128xf32>
    %122 = arith.mulf %121, %115 : vector<8x128xf32>
    %123 = arith.subf %120, %122 : vector<8x128xf32>
    %c0_22 = arith.constant 0 : index
    %c0_23 = arith.constant 0 : index
    %124 = vector.load %arg5[%c0_22, %c0_23] : memref<8x128xf32, #tpu.memory_space<vmem>>, vector<8x128xf32>
    tpu.vector_store %arg5[%c0_22, %c0_23], %123 {strides = array<i32>} : memref<8x128xf32, #tpu.memory_space<vmem>>, vector<8x128xf32>,
    return
  }
  func.func @transform_0(%arg0: i32) -> (i32, i32) {
    %c0_i32 = arith.constant 0 : i32
    %c0_i32_0 = arith.constant 0 : i32
    return %arg0, %c0_i32 : i32, i32
  }
  func.func @transform_1(%arg0: i32) -> (i32, i32) {
    %c0_i32 = arith.constant 0 : i32
    %c0_i32_0 = arith.constant 0 : i32
    return %arg0, %c0_i32 : i32, i32
  }
  func.func @transform_2(%arg0: i32) -> (i32, i32) {
    %c0_i32 = arith.constant 0 : i32
    %c0_i32_0 = arith.constant 0 : i32
    %c0_i32_1 = arith.constant 0 : i32
    return %c0_i32, %c0_i32_0 : i32, i32
  }
  func.func @transform_3(%arg0: i32) -> (i32, i32) {
    %c0_i32 = arith.constant 0 : i32
    %c0_i32_0 = arith.constant 0 : i32
    %c0_i32_1 = arith.constant 0 : i32
    return %c0_i32, %c0_i32_0 : i32, i32
  }
  func.func @transform_4(%arg0: i32) -> (i32, i32) {
    %c0_i32 = arith.constant 0 : i32
    %c0_i32_0 = arith.constant 0 : i32
    return %arg0, %c0_i32 : i32, i32
  }
}

</mosaic_0001>

<llo_original>
// kernel: tpu_custom_call.1
$region0: #{tpu_custom_call.1}
  #allocation0 [shape = 'u32[]', space=smem, size = 0x4, offset = 0x4, fixed_abs, tag = 'smem constant byte address 0x4 - core index']
  #allocation1 [shape = 'u32[144,128]{1,0:T(1,128)}', space=vmem, size = 0x12000, scoped, tag = 'internal scratch']
  %s0 = inlined_call_operand.vmem [shape: f32[16,128], index: 0, kind: input, shape index: {}]
  %s1 = inlined_call_operand.vmem [shape: f32[16,4], index: 1, kind: input, shape index: {}]
  %s2 = inlined_call_operand.hbm [shape: bf16[128,128], index: 2, kind: input, shape index: {}]
  %s3 = inlined_call_operand.vmem [shape: f32[4,128], index: 3, kind: input, shape index: {}]
  %s4 = inlined_call_operand.hbm [shape: f32[16,128], index: 4, kind: output, shape index: {}]
  %s5 = sld [smem:[#allocation0]]
  $region53: #{tpu_custom_call.1} parent=0
    _
  %s7 = ssub.s32 1, %s5
  %s8 = scalar_select 0, %s7, %s5
  $region1: #{tpu_custom_call.1} parent=0
    #allocation2 [shape = 'u8[32768]{0}', space=vmem, size = 0x8000, scoped, tag = 'input window, operand 2, single buffered']
    #allocation3 [shape = 's32[2]{0}', space=sflag, size = 0x8, scoped, tag = 'scoped memory for tpu_custom_call.1']
    #allocation4 [shape = 's32[2]{0}', space=sflag, size = 0x8, scoped, tag = 'scoped memory for tpu_custom_call.1']
    #allocation5 [shape = 'u8[8192]{0}', space=vmem, size = 0x2000, scoped, tag = 'output window, operand 0']
    %9 = vsyncpa [#allocation3], 0
    %10 = vsyncpa [#allocation4], 0
    %s11 = scalar_lea.sflag [#allocation4], 1
    %12 = vsyncpa %s11, 0
    loop: start=0, step=1, limit=4
    $region2: #{tpu_custom_call.1} parent=1 // loop_pre_header
      _
    $region3: #{tpu_custom_call.1} parent=1 // loop_header
      %s14 = sphi 0, %s18
      %p15 = scmp.ge.s32.totalorder %s14, 4
      %s24 = sphi 0, %s26
      %s27 = sphi 0, %s24
      %s28 = sphi 0, %s27
      %s44 = sphi 0, %s28
      %s50 = sphi 0, %s52
      %s53 = sphi 0, %s50
      %s54 = sphi 0, %s53
      %s70 = sphi 0, %s54
      %s74 = sphi 0, %s74
      %s76 = sphi 0, %s74
      %s77 = sphi 0, %s76
      %s91 = sphi 0, %s77
      %s95 = sphi 0, %s95
      %s97 = sphi 0, %s95
      %s98 = sphi 0, %s97
      %s112 = sphi 0, %s98
      %s118 = sphi 0, %s120
      %s121 = sphi 0, %s118
      %s122 = sphi 0, %s121
      %s138 = sphi 0, %s122
    $region4: #{tpu_custom_call.1} parent=1 // loop_header_branch
      %17 = sbr.rel (%p15) target = $region8
    $region5: #{tpu_custom_call.1} parent=1 // loop_body
      %s19 = ssub.s32 %s14, 1
      %s20 = ssub.s32 %s14, 2
      %s21 = sadd.s32 %s14, 1
      %s22 = ssub.s32 %s14, %s21
      %p23 = scmp.eq.s32.totalorder %s22, 0
      %s25 = sadd.s32 %s24, 1
      %s26 = scalar_select %p23, %s24, %s25
      %p29 = pneg %p23
      %p30 = scmp.eq.s32.totalorder %s14, 1
      %p31 = por %p29, %p30
      %p32 = scmp.ne.s32.totalorder %s24, %s27
      %p33 = scmp.eq.s32.totalorder %s14, 0
      %p34 = por %p32, %p33
      %p35 = scmp.ne.s32.totalorder %s24, %s27
      %p36 = scmp.eq.s32.totalorder %s19, 1
      %p37 = por %p35, %p36
      %p38 = scmp.ne.s32.totalorder %s27, %s28
      %p39 = scmp.eq.s32.totalorder %s19, 0
      %p40 = por %p38, %p39
      %p41 = scmp.ne.s32.totalorder %s27, %s28
      %p42 = scmp.eq.s32.totalorder %s20, 1
      %p43 = por %p41, %p42
      %p45 = scmp.ne.s32.totalorder %s28, %s44
      %p46 = scmp.eq.s32.totalorder %s20, 0
      %p47 = por %p45, %p46
      %s48 = ssub.s32 %s14, %s21
      %p49 = scmp.eq.s32.totalorder %s48, 0
      %s51 = sadd.s32 %s50, 1
      %s52 = scalar_select %p49, %s50, %s51
      %p55 = pneg %p49
      %p56 = scmp.eq.s32.totalorder %s14, 1
      %p57 = por %p55, %p56
      %p58 = scmp.ne.s32.totalorder %s50, %s53
      %p59 = scmp.eq.s32.totalorder %s14, 0
      %p60 = por %p58, %p59
      %p61 = scmp.ne.s32.totalorder %s50, %s53
      %p62 = scmp.eq.s32.totalorder %s19, 1
      %p63 = por %p61, %p62
      %p64 = scmp.ne.s32.totalorder %s53, %s54
      %p65 = scmp.eq.s32.totalorder %s19, 0
      %p66 = por %p64, %p65
      %p67 = scmp.ne.s32.totalorder %s53, %s54
      %p68 = scmp.eq.s32.totalorder %s20, 1
      %p69 = por %p67, %p68
      %p71 = scmp.ne.s32.totalorder %s54, %s70
      %p72 = scmp.eq.s32.totalorder %s20, 0
      %p73 = por %p71, %p72
      %s75 = sadd.s32 %s74, 1
      %p78 = scmp.eq.s32.totalorder %s14, 1
      %p79 = scmp.ne.s32.totalorder %s74, %s76
      %p80 = scmp.eq.s32.totalorder %s14, 0
      %p81 = por %p79, %p80
      %p82 = scmp.ne.s32.totalorder %s74, %s76
      %p83 = scmp.eq.s32.totalorder %s19, 1
      %p84 = por %p82, %p83
      %p85 = scmp.ne.s32.totalorder %s76, %s77
      %p86 = scmp.eq.s32.totalorder %s19, 0
      %p87 = por %p85, %p86
      %p88 = scmp.ne.s32.totalorder %s76, %s77
      %p89 = scmp.eq.s32.totalorder %s20, 1
      %p90 = por %p88, %p89
      %p92 = scmp.ne.s32.totalorder %s77, %s91
      %p93 = scmp.eq.s32.totalorder %s20, 0
      %p94 = por %p92, %p93
      %s96 = sadd.s32 %s95, 1
      %p99 = scmp.eq.s32.totalorder %s14, 1
      %p100 = scmp.ne.s32.totalorder %s95, %s97
      %p101 = scmp.eq.s32.totalorder %s14, 0
      %p102 = por %p100, %p101
      %p103 = scmp.ne.s32.totalorder %s95, %s97
      %p104 = scmp.eq.s32.totalorder %s19, 1
      %p105 = por %p103, %p104
      %p106 = scmp.ne.s32.totalorder %s97, %s98
      %p107 = scmp.eq.s32.totalorder %s19, 0
      %p108 = por %p106, %p107
      %p109 = scmp.ne.s32.totalorder %s97, %s98
      %p110 = scmp.eq.s32.totalorder %s20, 1
      %p111 = por %p109, %p110
      %p113 = scmp.ne.s32.totalorder %s98, %s112
      %p114 = scmp.eq.s32.totalorder %s20, 0
      %p115 = por %p113, %p114
      %s116 = ssub.s32 %s14, %s21
      %p117 = scmp.eq.s32.totalorder %s116, 0
      %s119 = sadd.s32 %s118, 1
      %s120 = scalar_select %p117, %s118, %s119
      %p123 = pneg %p117
      %p124 = scmp.eq.s32.totalorder %s14, 1
      %p125 = por %p123, %p124
      %p126 = scmp.ne.s32.totalorder %s118, %s121
      %p127 = scmp.eq.s32.totalorder %s14, 0
      %p128 = por %p126, %p127
      %p129 = scmp.ne.s32.totalorder %s118, %s121
      %p130 = scmp.eq.s32.totalorder %s19, 1
      %p131 = por %p129, %p130
      %p132 = scmp.ne.s32.totalorder %s121, %s122
      %p133 = scmp.eq.s32.totalorder %s19, 0
      %p134 = por %p132, %p133
      %p135 = scmp.ne.s32.totalorder %s121, %s122
      %p136 = scmp.eq.s32.totalorder %s20, 1
      %p137 = por %p135, %p136
      %p139 = scmp.ne.s32.totalorder %s122, %s138
      %p140 = scmp.eq.s32.totalorder %s20, 0
      %p141 = por %p139, %p140
      %p142 = scmp.le.s32.totalorder 1, %s14
      %p143 = scmp.lt.s32.totalorder %s14, 3
      %p144 = pnand %p142, %p143
      %p145 = pneg %p144
      // Predicated region
      $region9: #{tpu_custom_call.1} parent=5 // pred_check
        _
      $region10: #{tpu_custom_call.1} parent=5 // pred_check_branch
        %147 = sbr.rel (%p144) target = $region12
      $region11: #{tpu_custom_call.1} parent=5 // pred_region
        %s148 = ssub.s32 %s14, 1
        // Predicated region
        $region13: #{tpu_custom_call.1} parent=11 // pred_check
          %p149 = pneg %p87
        $region14: #{tpu_custom_call.1} parent=11 // pred_check_branch
          %151 = sbr.rel (%p149) target = $region16
        $region15: #{tpu_custom_call.1} parent=11 // pred_region
          %s153 = ssub.s32 1024, 1024
          %154 = vsyncadd [#allocation3], %s153
          %s155 = sshll.u32 [#allocation2], 4
          %s156 = int_to_ptr.vmem [resolvable:$true] %s155
          %161 = dma.hbm_to_vmem [thread:$0]  %s2, 1024, %s156, [#allocation3], 64, 64, 4
        $region16: #{tpu_custom_call.1} parent=11 // pred_fallthru
          _
        // Predicated region
        $region17: #{tpu_custom_call.1} parent=11 // pred_check
          %p162 = pneg %p108
        $region18: #{tpu_custom_call.1} parent=11 // pred_check_branch
          %164 = sbr.rel (%p162) target = $region20
        $region19: #{tpu_custom_call.1} parent=11 // pred_region
          _
        $region20: #{tpu_custom_call.1} parent=11 // pred_fallthru
          _
      $region12: #{tpu_custom_call.1} parent=5 // pred_fallthru
        _
      %p165 = scmp.lt.s32.totalorder %s14, 2
      // Predicated region
      $region21: #{tpu_custom_call.1} parent=5 // pred_check
        %p166 = pneg %p165
      $region22: #{tpu_custom_call.1} parent=5 // pred_check_branch
        %168 = sbr.rel (%p166) target = $region24
      $region23: #{tpu_custom_call.1} parent=5 // pred_region
        // Predicated region
        $region25: #{tpu_custom_call.1} parent=23 // pred_check
          %p169 = pneg %p34
        $region26: #{tpu_custom_call.1} parent=23 // pred_check_branch
          %171 = sbr.rel (%p169) target = $region28
        $region27: #{tpu_custom_call.1} parent=23 // pred_region
          %p172 = scmp.lt.s32.totalorder %s14, 1
          %s173 = scalar_select %p172, %s14, 1
          %s174 = smul.addr %s173, 8
          %s175 = scalar_lea.vmem %s0, %s174
        $region28: #{tpu_custom_call.1} parent=23 // pred_fallthru
          _
        // Predicated region
        $region29: #{tpu_custom_call.1} parent=23 // pred_check
          %p176 = pneg %p60
        $region30: #{tpu_custom_call.1} parent=23 // pred_check_branch
          %178 = sbr.rel (%p176) target = $region32
        $region31: #{tpu_custom_call.1} parent=23 // pred_region
          %p179 = scmp.lt.s32.totalorder %s14, 1
          %s180 = scalar_select %p179, %s14, 1
          %s181 = smul.addr %s180, 8
          %s182 = scalar_lea.vmem %s1, %s181
        $region32: #{tpu_custom_call.1} parent=23 // pred_fallthru
          _
      $region24: #{tpu_custom_call.1} parent=5 // pred_fallthru
        _
      %p183 = scmp.le.s32.totalorder 1, %s14
      %p184 = scmp.lt.s32.totalorder %s14, 3
      %p185 = pnand %p183, %p184
      %p186 = pneg %p185
      // Predicated region
      $region33: #{tpu_custom_call.1} parent=5 // pred_check
        _
      $region34: #{tpu_custom_call.1} parent=5 // pred_check_branch
        %188 = sbr.rel (%p185) target = $region36
      $region35: #{tpu_custom_call.1} parent=5 // pred_region
        %s189 = ssub.s32 %s14, 1
        // Predicated region
        $region37: #{tpu_custom_call.1} parent=35 // pred_check
          %p190 = pneg %p87
        $region38: #{tpu_custom_call.1} parent=35 // pred_check_branch
          %192 = sbr.rel (%p190) target = $region40
        $region39: #{tpu_custom_call.1} parent=35 // pred_region
          %193 = dma.done [#allocation3], 1024
        $region40: #{tpu_custom_call.1} parent=35 // pred_fallthru
          _
        %p194 = scmp.lt.s32.totalorder %s19, 1
        %s195 = scalar_select %p194, %s19, 1
        %s196 = smul.addr %s195, 8
        %s197 = scalar_lea.vmem %s0, %s196
        %p198 = pneg %p40
        %p199 = pneg %p37
        %p200 = scmp.lt.s32.totalorder %s19, 1
        %s201 = scalar_select %p200, %s19, 1
        %s202 = smul.addr %s201, 8
        %s203 = scalar_lea.vmem %s1, %s202
        %p204 = pneg %p66
        %p205 = pneg %p63
        %p206 = pneg %p87
        %p207 = pneg %p84
        %p208 = pneg %p108
        %p209 = pneg %p105
        %p210 = pneg %p134
        %p211 = pneg %p131
        %s212 = sand.u32 %s121, 1
        %s213 = scalar_lea.sflag [#allocation4], %s212
        %s214 = sand.u32 %s121, 1
        %s215 = smul.addr %s214, 8
        %s216 = scalar_lea.vmem [#allocation5], %s215
        %p217 = scmp.lt.s32.totalorder %s19, 1
        %s218 = scalar_select %p217, %s19, 1
        %s219 = smul.addr %s218, 8
        %s220 = scalar_lea.vmem %s0, %s219
        %p221 = scmp.lt.s32.totalorder %s19, 1
        %s222 = scalar_select %p221, %s19, 1
        %s223 = smul.addr %s222, 8
        %s224 = scalar_lea.vmem %s1, %s223
        %v226 = vld [vmem:[%s220] sm:$0xff]
        %227 = vmax.xlane.f32.xlu0 %v226
        %v228 = vpop.xlane.xlu0 %227
        %v229 = vsub.f32 %v226, %v228
        %v230 = vmul.f32 %v229, 1.442695
        %v231 = vpow.pop %v230
        %v232 = vpack.c.bf16 %v231, %v231
        %v233 = vld [vmem:[#allocation2] sm:$0xf]
        %v234 = vld [vmem:[#allocation2 + $0x4] sm:$0xf]
        %v235 = vld [vmem:[#allocation2 + $0x8] sm:$0xf]
        %v236 = vld [vmem:[#allocation2 + $0xc] sm:$0xf]
        %v237 = vld [vmem:[#allocation2 + $0x10] sm:$0xf]
        %v238 = vld [vmem:[#allocation2 + $0x14] sm:$0xf]
        %v239 = vld [vmem:[#allocation2 + $0x18] sm:$0xf]
        %v240 = vld [vmem:[#allocation2 + $0x1c] sm:$0xf]
        %v241 = vld [vmem:[#allocation2 + $0x20] sm:$0xf]
        %v242 = vld [vmem:[#allocation2 + $0x24] sm:$0xf]
        %v243 = vld [vmem:[#allocation2 + $0x28] sm:$0xf]
        %v244 = vld [vmem:[#allocation2 + $0x2c] sm:$0xf]
        %v245 = vld [vmem:[#allocation2 + $0x30] sm:$0xf]
        %v246 = vld [vmem:[#allocation2 + $0x34] sm:$0xf]
        %v247 = vld [vmem:[#allocation2 + $0x38] sm:$0xf]
        %v248 = vld [vmem:[#allocation2 + $0x3c] sm:$0xf]
        %v265 = vunpack.c.l.b16 %v233
        %v266 = vunpack.c.l.b16 %v234
        %v267 = vunpack.c.l.b16 %v235
        %v268 = vunpack.c.l.b16 %v236
        %v269 = vunpack.c.l.b16 %v237
        %v270 = vunpack.c.l.b16 %v238
        %v271 = vunpack.c.l.b16 %v239
        %v272 = vunpack.c.l.b16 %v240
        %v273 = vunpack.c.l.b16 %v241
        %v274 = vunpack.c.l.b16 %v242
        %v275 = vunpack.c.l.b16 %v243
        %v276 = vunpack.c.l.b16 %v244
        %v277 = vunpack.c.l.b16 %v245
        %v278 = vunpack.c.l.b16 %v246
        %v279 = vunpack.c.l.b16 %v247
        %v280 = vunpack.c.l.b16 %v248
        %v281 = vpack.c.b16 %v266, %v265
        %v282 = vpack.c.b16 %v268, %v267
        %v283 = vpack.c.b16 %v270, %v269
        %v284 = vpack.c.b16 %v272, %v271
        %v285 = vpack.c.b16 %v274, %v273
        %v286 = vpack.c.b16 %v276, %v275
        %v287 = vpack.c.b16 %v278, %v277
        %v288 = vpack.c.b16 %v280, %v279
        %297 = vmatprep.subr.bf16.mxu0 0
        %298 = vmatpush1.bf16.msra.mxu0 %v288
        %299 = vmatprep.subr.bf16.mxu0 0
        %300 = vmatpush1.bf16.msra.mxu0 %v287
        %301 = vmatprep.subr.bf16.mxu0 0
        %302 = vmatpush1.bf16.msra.mxu0 %v286
        %303 = vmatprep.subr.bf16.mxu0 0
        %304 = vmatpush1.bf16.msra.mxu0 %v285
        %305 = vmatprep.subr.bf16.mxu0 0
        %306 = vmatpush1.bf16.msra.mxu0 %v284
        %307 = vmatprep.subr.bf16.mxu0 0
        %308 = vmatpush1.bf16.msra.mxu0 %v283
        %309 = vmatprep.subr.bf16.mxu0 0
        %310 = vmatpush1.bf16.msra.mxu0 %v282
        %311 = vmatprep.subr.bf16.mxu0 0
        %312 = vmatpush1.bf16.msra.mxu0 %v281
        %313 = vmatprep.subr.bf16.mxu0 0
        %314 = vmatpush2.bf16.msra.mxu0 0
        %315 = vmatprep.subr.bf16.mxu0 0
        %316 = vmatpush2.bf16.msra.mxu0 0
        %317 = vmatprep.subr.bf16.mxu0 0
        %318 = vmatpush2.bf16.msra.mxu0 0
        %319 = vmatprep.subr.bf16.mxu0 0
        %320 = vmatpush2.bf16.msra.mxu0 0
        %321 = vmatprep.subr.bf16.mxu0 0
        %322 = vmatpush2.bf16.msra.mxu0 0
        %323 = vmatprep.subr.bf16.mxu0 0
        %324 = vmatpush2.bf16.msra.mxu0 0
        %325 = vmatprep.subr.bf16.mxu0 0
        %326 = vmatpush2.bf16.msra.mxu0 0
        %327 = vmatprep.subr.bf16.mxu0 0
        %328 = vmatpush2.bf16.msra.mxu0 0
        %329 = vmatprep.mubr.bf16.mxu0 0
        %330 = vmatmul.mubr.bf16.gmra.mxu0 %v232
        %v331 = vpop.f32.mrf.mxu0
        %v332 = vadd.f32 0.0, %v331
        %v333 = vpop.f32.mrf.mxu0
        %v334 = vpop.f32.mrf.mxu0
        %v335 = vpop.f32.mrf.mxu0
        %336 = vdwg.mxu0
        %337 = vadd.xlane.f32.xlu0 %v231
        %v338 = vpop.xlane.xlu0 %337
        %v339 = vrcp.pop %v338
        %v340 = vmul.f32 1.0, %v339
        %v341 = vld [vmem:[%s224] sm:$0xff]
        %v342 = vld [vmem:[%s3] sm:$0xf]
        %344 = vset.pattern.permute.xlu0 0
        %345 = vperm.xlu0 %344, %v341
        %v346 = vpop.permute.xlu0 %345
        %v348 = vlaneseq
        %v349 = vshrl.u32 %v348, 7
        %v350 = vsub.s32 0, %v349
        %v351 = vrot.slane %v342, %v350
        %v352 = vsub.f32 %v346, %v351
        %v353 = vand.u32 2147483647, %v352
        %354 = vset.pattern.permute.xlu0 1
        %355 = vperm.xlu0 %354, %v341
        %v356 = vpop.permute.xlu0 %355
        %v358 = vlaneseq
        %v359 = vshrl.u32 %v358, 7
        %v360 = vsub.s32 1, %v359
        %v361 = vrot.slane %v342, %v360
        %v362 = vsub.f32 %v356, %v361
        %v363 = vand.u32 2147483647, %v362
        %v364 = vadd.f32 %v353, %v363
        %365 = vset.pattern.permute.xlu0 2
        %366 = vperm.xlu0 %365, %v341
        %v367 = vpop.permute.xlu0 %366
        %v369 = vlaneseq
        %v370 = vshrl.u32 %v369, 7
        %v371 = vsub.s32 2, %v370
        %v372 = vrot.slane %v342, %v371
        %v373 = vsub.f32 %v367, %v372
        %v374 = vand.u32 2147483647, %v373
        %v375 = vadd.f32 %v364, %v374
        %376 = vset.pattern.permute.xlu0 3
        %377 = vperm.xlu0 %376, %v341
        %v378 = vpop.permute.xlu0 %377
        %v380 = vlaneseq
        %v381 = vshrl.u32 %v380, 7
        %v382 = vsub.s32 3, %v381
        %v383 = vrot.slane %v342, %v382
        %v384 = vsub.f32 %v378, %v383
        %v385 = vand.u32 2147483647, %v384
        %v386 = vadd.f32 %v375, %v385
        %v387 = vmul.f32 %v341, 0.5
        %389 = vrot.lane.b32.xlu0 %v387, 126
        %v390 = vpop.permute.xlu0 %389
        %v392 = vsub.f32 %v341, %v390
        %v393 = vadd.f32 %v341, %v390
        %v394 = vmul.f32 %v342, 0.5
        %v396 = vrot.slane %v394, 2
        %v398 = vsub.f32 %v342, %v396
        %v399 = vadd.f32 %v342, %v396
        %v400 = vsub.f32 %v393, %v392
        %402 = vrot.lane.b32.xlu0 %v400, 127
        %v403 = vpop.permute.xlu0 %402
        %v405 = vmul.f32 %v400, %v403
        %v406 = vsub.f32 %v399, %v398
        %v408 = vrot.slane %v406, 1
        %v410 = vmul.f32 %v406, %v408
        %412 = vset.pattern.permute.xlu0 0
        %413 = vperm.xlu0 %412, %v392
        %v414 = vpop.permute.xlu0 %413
        %v416 = vlaneseq
        %v417 = vshrl.u32 %v416, 7
        %v418 = vsub.s32 0, %v417
        %v419 = vrot.slane %v398, %v418
        %v420 = vmax.f32 %v414, %v419
        %421 = vset.pattern.permute.xlu0 1
        %422 = vperm.xlu0 %421, %v392
        %v423 = vpop.permute.xlu0 %422
        %v425 = vlaneseq
        %v426 = vshrl.u32 %v425, 7
        %v427 = vsub.s32 1, %v426
        %v428 = vrot.slane %v398, %v427
        %v429 = vmax.f32 %v423, %v428
        %431 = vset.pattern.permute.xlu0 0
        %432 = vperm.xlu0 %431, %v393
        %v433 = vpop.permute.xlu0 %432
        %v435 = vlaneseq
        %v436 = vshrl.u32 %v435, 7
        %v437 = vsub.s32 0, %v436
        %v438 = vrot.slane %v399, %v437
        %v439 = vmin.f32 %v433, %v438
        %440 = vset.pattern.permute.xlu0 1
        %441 = vperm.xlu0 %440, %v393
        %v442 = vpop.permute.xlu0 %441
        %v444 = vlaneseq
        %v445 = vshrl.u32 %v444, 7
        %v446 = vsub.s32 1, %v445
        %v447 = vrot.slane %v399, %v446
        %v448 = vmin.f32 %v442, %v447
        %v449 = vsub.f32 %v439, %v420
        %v450 = vmax.f32 %v449, 0.0
        %v451 = vsub.f32 %v448, %v429
        %v452 = vmax.f32 %v451, 0.0
        %v453 = vmul.f32 %v450, %v452
        %455 = vset.pattern.permute.xlu0 0
        %456 = vperm.xlu0 %455, %v405
        %v457 = vpop.permute.xlu0 %456
        %v459 = vlaneseq
        %v460 = vshrl.u32 %v459, 7
        %v461 = vsub.s32 0, %v460
        %v462 = vrot.slane %v410, %v461
        %v463 = vadd.f32 %v457, %v462
        %v464 = vsub.f32 %v463, %v453
        %v465 = vrcp.pop %v464
        %v466 = vmul.f32 %v453, %v465
        %v467 = vmin.f32 %v414, %v419
        %v468 = vmin.f32 %v423, %v428
        %v469 = vmax.f32 %v433, %v438
        %v470 = vmax.f32 %v442, %v447
        %v471 = vsub.f32 %v469, %v467
        %v472 = vsub.f32 %v470, %v468
        %v473 = vmul.f32 %v471, %v472
        %v474 = vsub.f32 %v473, %v464
        %v475 = vrcp.pop %v473
        %v476 = vmul.f32 %v474, %v475
        %v477 = vsub.f32 %v466, %v476
        %v478 = vmul.f32 %v332, %v340
        %v479 = vadd.f32 %v386, %v478
        %v480 = vsub.f32 %v479, %v477
        %481 = vst [vmem:[%s216] sm:$0xff] %v480
        %s482 = sand.u32 %s121, 1
        %s483 = scalar_lea.sflag [#allocation4], %s482
        %s484 = sand.u32 %s121, 1
        %s485 = smul.addr %s484, 8
        %s486 = scalar_lea.vmem [#allocation5], %s485
        // Predicated region
        $region41: #{tpu_custom_call.1} parent=35 // pred_check
          %p487 = pneg %p131
        $region42: #{tpu_custom_call.1} parent=35 // pred_check_branch
          %489 = sbr.rel (%p487) target = $region44
        $region43: #{tpu_custom_call.1} parent=35 // pred_region
          %s491 = ssub.s32 128, 128
          %492 = vsyncadd %s483, %s491
          %s493 = smul.addr %s19, 128
          %s494 = scalar_lea.hbm %s4, %s493
          %s496 = sshll.u32 %s486, 4
          %s497 = int_to_ptr.vmem [resolvable:$true] %s496
          %499 = dma.vmem_to_hbm [thread:$0]  %s497, 128, %s494, %s483
        $region44: #{tpu_custom_call.1} parent=35 // pred_fallthru
          _
      $region36: #{tpu_custom_call.1} parent=5 // pred_fallthru
        _
      %p500 = scmp.le.s32.totalorder 2, %s14
      // Predicated region
      $region45: #{tpu_custom_call.1} parent=5 // pred_check
        %p501 = pneg %p500
      $region46: #{tpu_custom_call.1} parent=5 // pred_check_branch
        %503 = sbr.rel (%p501) target = $region48
      $region47: #{tpu_custom_call.1} parent=5 // pred_region
        %s504 = ssub.s32 %s14, 2
        // Predicated region
        $region49: #{tpu_custom_call.1} parent=47 // pred_check
          %p505 = pneg %p137
        $region50: #{tpu_custom_call.1} parent=47 // pred_check_branch
          %507 = sbr.rel (%p505) target = $region52
        $region51: #{tpu_custom_call.1} parent=47 // pred_region
          %s508 = sand.u32 %s122, 1
          %s509 = scalar_lea.sflag [#allocation4], %s508
          %s510 = sand.u32 %s122, 1
          %s511 = smul.addr %s510, 8
          %s512 = scalar_lea.vmem [#allocation5], %s511
          %513 = dma.done %s509, 128
        $region52: #{tpu_custom_call.1} parent=47 // pred_fallthru
          _
      $region48: #{tpu_custom_call.1} parent=5 // pred_fallthru
        _
    $region6: #{tpu_custom_call.1} parent=1 // loop_footer
      %s18 = sadd.s32 1, %s14
    $region7: #{tpu_custom_call.1} parent=1 // loop_footer_branch
      %13 = sbr.rel target = $region3
    $region8: #{tpu_custom_call.1} parent=1 // loop_exit
      _
    %514 = vsyncpa [#allocation3], 1
    %s515 = scalar_lea.sflag [#allocation3], 1
    %516 = vsyncpa %s515, 1
    %517 = vsyncpa [#allocation4], 1
    %s518 = scalar_lea.sflag [#allocation4], 1
    %519 = vsyncpa %s518, 1

</llo_original>
